<compile_context>
chip_gen: v7x
topology: tpu7x:2x2x1
jax: 0.10.0
libtpu: 0.0.40
codegen_flags: <defaults>
</compile_context>

<pallas_src>
import jax
import jax.numpy as jnp
from jax.experimental import pallas as pl
from jax.experimental.pallas import tpu as pltpu

# Scaled-down stand-ins for the hard-coded 768 / 256 / 512 dims of the module.
TEXT_DIM = 96        # text_dim   (768 in the reference)
IMAGE_DIM = 32       # image_dim  (256 in the reference)
HIDDEN_DIM = 64      # co-attention hidden_dim (512 in the reference)
FUSION_HIDDEN = 128  # fusion MLP hidden (512 in the reference)
NUM_CLASSES = 4
OUT_PAD = 128        # lane-dense padded width of the final logits block
K_IN = TEXT_DIM + IMAGE_DIM          # 128 here, 1024 at reference dims
SCALE = HIDDEN_DIM ** (-0.5)

# TODO(synk): the reference fusion_fc is nn.Linear(768+256, 512) but the actual
# concatenation is [attended_text, attended_image, text, image] = 3*768+256
# features, which would be a runtime shape mismatch in PyTorch; here fc1 takes
# the true concatenated width 3*TEXT_DIM + IMAGE_DIM (order preserved).
FUSED_DIM = 3 * TEXT_DIM + IMAGE_DIM


def _round_up(n, m):
    return ((n + m - 1) // m) * m


def _vmem_limit_bytes(default=32 * 1024 * 1024):
    # Generation-aware scoped-VMEM cap: v5e/v6e (128 MiB physical) can go to
    # ~96 MiB; v7x (64 MiB physical) is capped at 3/4 of capacity (48 MiB).
    try:
        cap = pltpu.get_tpu_info().vmem_capacity_bytes
        return int(min(96 * 1024 * 1024, (cap * 3) // 4))
    except Exception:
        return default


# --------------------------------------------------------------------------- #
# One-time parameter transform (hoisted out of the per-call path).            #
# --------------------------------------------------------------------------- #
def prepare_fusion_params(params, compute_dtype=jnp.bfloat16):
    cdt = compute_dtype
    w1 = params["w_fc1"]                                   # (FUSED_DIM, FH) f32
    # Fold fc1 row blocks: fused = [attended_text, attended_image, text, image]
    # and attended_text == attended_image == text exactly (softmax over a
    # length-1 axis is 1.0), so the first three TEXT_DIM row blocks collapse.
    w1_text = (w1[0:TEXT_DIM]
               + w1[TEXT_DIM:2 * TEXT_DIM]
               + w1[2 * TEXT_DIM:3 * TEXT_DIM])
    # Stack with the image block so the kernel issues ONE lane-aligned
    # K = TEXT_DIM + IMAGE_DIM matmul instead of two partial-depth ones.
    w1_fused = jnp.concatenate([w1_text, w1[3 * TEXT_DIM:]], axis=0).astype(cdt)
    b1 = params["b_fc1"].reshape(1, FUSION_HIDDEN).astype(jnp.float32)

    # Zero-pad fc2 to a lane-dense 128-wide output.
    w2 = jnp.zeros((FUSION_HIDDEN, OUT_PAD), cdt)
    w2 = w2.at[:, :NUM_CLASSES].set(params["w_fc2"].astype(cdt))
    b2 = jnp.zeros((1, OUT_PAD), jnp.float32)
    b2 = b2.at[:, :NUM_CLASSES].set(
        params["b_fc2"].reshape(1, NUM_CLASSES).astype(jnp.float32))
    return {"w1": w1_fused, "b1": b1, "w2": w2, "b2": b2}


# --------------------------------------------------------------------------- #
# Pallas kernel: one batch tile of the folded co-attention + fusion MLP head. #
# --------------------------------------------------------------------------- #
def fusion_kernel(x_ref, w1_ref, b1_ref, w2_ref, b2_ref, out_ref):
    # x_ref:  (TB, K_IN)  bf16   -- [text | image] fused activations
    # w1_ref: (K_IN, FUSION_HIDDEN) bf16 (folded/stacked fc1)
    # b1_ref: (1, FUSION_HIDDEN)  f32
    # w2_ref: (FUSION_HIDDEN, OUT_PAD) bf16 (zero-padded beyond NUM_CLASSES)
    # b2_ref: (1, OUT_PAD)        f32
    # out_ref:(TB, OUT_PAD)       bf16  (lane-dense; sliced outside)
    h = jnp.dot(x_ref[...], w1_ref[...], preferred_element_type=jnp.float32)
    h = jnp.maximum(h + b1_ref[...], 0.0)     # fc1 bias + ReLU, f32 accumulate
    # Dropout: inference mode -> identity.
    out = jnp.dot(h.astype(w2_ref.dtype), w2_ref[...],
                  preferred_element_type=jnp.float32) + b2_ref[...]
    out_ref[...] = out.astype(out_ref.dtype)


def fusion_forward(text_features, image_features, fusion_params, *,
                   block_batch=512):
    """Co-attention + fusion MLP fused into one batch-gridded Pallas kernel.

    `fusion_params` must come from prepare_fusion_params() (one-time prep).
    """
    b = text_features.shape[0]
    cdt = fusion_params["w1"].dtype

    # Single per-call activation prep: concat text/image (already bf16 from the
    # backbones) into one lane-aligned (b, K_IN) operand.  No batch zero-pad:
    # a cdiv grid + Pallas edge-block masking handle ragged batches.
    fused = jnp.concatenate([text_features.astype(cdt),
                             image_features.astype(cdt)], axis=1)

    # Batch tile: multiple of 16 (bf16 sublane packing), multiple-of-256
    # default (block_batch=512) for the v6e/v7x MXU; batches > block_batch get
    # >= 2 "parallel" grid steps so v7x megacore uses both TensorCores.
    tb = min(block_batch, _round_up(max(b, 1), 16))
    grid = (pl.cdiv(b, tb),)

    # Advisory cost estimate for the XLA scheduler.
    flops = 2 * b * (K_IN * FUSION_HIDDEN + FUSION_HIDDEN * OUT_PAD)
    itemsz = jnp.dtype(cdt).itemsize
    bytes_accessed = int(
        fused.size * itemsz
        + (fusion_params["w1"].size + fusion_params["w2"].size) * itemsz
        + (fusion_params["b1"].size + fusion_params["b2"].size) * 4
        + b * OUT_PAD * itemsz)

    out = pl.pallas_call(
        fusion_kernel,
        out_shape=jax.ShapeDtypeStruct((b, OUT_PAD), cdt),
        grid_spec=pltpu.PrefetchScalarGridSpec(
            num_scalar_prefetch=0,
            grid=grid,
            in_specs=[
                # activations: blocked over the batch, double-buffered
                pl.BlockSpec((tb, K_IN), lambda i: (i, 0)),
                # weights / biases: resident (same block every grid step)
                pl.BlockSpec((K_IN, FUSION_HIDDEN), lambda i: (0, 0)),
                pl.BlockSpec((1, FUSION_HIDDEN), lambda i: (0, 0)),
                pl.BlockSpec((FUSION_HIDDEN, OUT_PAD), lambda i: (0, 0)),
                pl.BlockSpec((1, OUT_PAD), lambda i: (0, 0)),
            ],
            out_specs=pl.BlockSpec((tb, OUT_PAD), lambda i: (i, 0)),
        ),
        compiler_params=pltpu.CompilerParams(
            dimension_semantics=("parallel",),      # megacore-shard the batch
            vmem_limit_bytes=_vmem_limit_bytes(),
        ),
        cost_estimate=pl.CostEstimate(
            flops=flops, transcendentals=0, bytes_accessed=bytes_accessed),
    )(fused, fusion_params["w1"], fusion_params["b1"],
      fusion_params["w2"], fusion_params["b2"])

    return out[:, :NUM_CLASSES]


# ---------------- stub backbones (plain-JAX glue, emit bf16) ---------------- #
def image_model(image_nchw, params):
    # TODO(synk): ImageModel backbone is not defined in the reference module;
    # stand in with a deterministic linear projection of the flattened image.
    b = image_nchw.shape[0]
    flat = image_nchw.reshape(b, -1)
    return (flat @ params["img_w"] + params["img_b"]).astype(jnp.bfloat16)


def text_model(input_ids, params):
    # TODO(synk): TextModel backbone is not defined in the reference module;
    # stand in with a deterministic embedding-mean + linear projection.
    emb = params["tok_emb"][input_ids]          # [B, S, E]
    pooled = emb.mean(axis=1)                   # [B, E]
    return (pooled @ params["txt_w"] + params["txt_b"]).astype(jnp.bfloat16)


def model_forward(x, params, fusion_params):
    image_features = image_model(x["image"], params)     # [B, IMAGE_DIM] bf16
    text_features = text_model(x["input_ids"], params)   # [B, TEXT_DIM]  bf16
    # unsqueeze(1)/squeeze(1) around the co-attention are no-ops at seq_len==1;
    # the Pallas kernel consumes the squeezed [B, D] layout directly.
    logits = fusion_forward(text_features, image_features, fusion_params)
    return logits.astype(jnp.float32)           # tiny (b, 4) upcast


# ---------------- literal plain-JAX reference (for correctness check) ------- #
def _coattention_ref(text_3d, image_2d, p):
    img = image_2d[:, None, :]                                        # [B,1,Di]
    text_query = text_3d @ p["w_t2i"] + p["b_t2i"]                    # [B,1,H]
    image_key = img @ p["w_i2t"] + p["b_i2t"]                         # [B,1,H]
    image_attn = jnp.einsum("bqh,bkh->bqk", text_query, image_key) * SCALE
    image_attn_w = jax.nn.softmax(image_attn, axis=1)                 # dim=1
    attended_image = jnp.einsum("bqk,bqd->bkd", image_attn_w, text_3d)[:, 0]
    image_query = img @ p["w_i2tq"] + p["b_i2tq"]
    text_key = text_3d @ p["w_t2ik"] + p["b_t2ik"]
    text_attn = jnp.einsum("bqh,bkh->bqk", image_query, text_key) * SCALE
    text_attn_w = jax.nn.softmax(text_attn, axis=2)                   # dim=2
    attended_text = jnp.einsum("bqk,bkd->bqd", text_attn_w, text_3d)[:, 0]
    return attended_text, attended_image


def reference_forward(text_features, image_features, p):
    tf = text_features.astype(jnp.float32)
    imf = image_features.astype(jnp.float32)
    at, ai = _coattention_ref(tf[:, None, :], imf, p)
    fused = jnp.concatenate([at, ai, tf, imf], axis=1)
    h = jax.nn.relu(fused @ p["w_fc1"] + p["b_fc1"])
    return h @ p["w_fc2"] + p["b_fc2"]


def init_params(key):
    ks = jax.random.split(key, 16)

    def lin(k, din, dout, scale=0.02):
        kw, kb = jax.random.split(k)
        return (jax.random.normal(kw, (din, dout), jnp.float32) * scale,
                jax.random.normal(kb, (1, dout), jnp.float32) * scale)

    p = {}
    # CoAttention (kept for the literal reference path; the kernel output does
    # not depend on them because both softmaxes run over a length-1 axis).
    p["w_t2i"], p["b_t2i"] = lin(ks[0], TEXT_DIM, HIDDEN_DIM)
    p["w_i2t"], p["b_i2t"] = lin(ks[1], IMAGE_DIM, HIDDEN_DIM)
    p["w_i2tq"], p["b_i2tq"] = lin(ks[2], IMAGE_DIM, HIDDEN_DIM)
    p["w_t2ik"], p["b_t2ik"] = lin(ks[3], TEXT_DIM, HIDDEN_DIM)
    # fusion_fc
    p["w_fc1"], p["b_fc1"] = lin(ks[4], FUSED_DIM, FUSION_HIDDEN)
    p["w_fc2"], p["b_fc2"] = lin(ks[5], FUSION_HIDDEN, NUM_CLASSES)
    # stub backbones
    c, hh, ww = 3, 16, 16
    p["img_w"] = jax.random.normal(ks[6], (c * hh * ww, IMAGE_DIM), jnp.float32) * 0.02
    p["img_b"] = jax.random.normal(ks[7], (IMAGE_DIM,), jnp.float32) * 0.02
    vocab, emb_dim = 100, 48
    p["tok_emb"] = jax.random.normal(ks[8], (vocab, emb_dim), jnp.float32) * 0.02
    p["txt_w"] = jax.random.normal(ks[9], (emb_dim, TEXT_DIM), jnp.float32) * 0.02
    p["txt_b"] = jax.random.normal(ks[10], (TEXT_DIM,), jnp.float32) * 0.02
    return p


if __name__ == "__main__":
    key = jax.random.PRNGKey(0)
    k_img, k_ids, k_par = jax.random.split(key, 3)

    batch = 2
    x = {
        "image": jax.random.normal(k_img, (batch, 3, 16, 16), jnp.float32),  # NCHW
        "input_ids": jax.random.randint(k_ids, (batch, 8), 0, 100, jnp.int32),
    }
    params = init_params(k_par)
    fusion_params = prepare_fusion_params(params)   # one-time weight transform
    jax.block_until_ready(fusion_params["w1"])

    y_pred = model_forward(x, params, fusion_params)   # [batch, NUM_CLASSES]
    jax.block_until_ready(y_pred)
    assert y_pred.shape == (batch, NUM_CLASSES)
    assert bool(jnp.all(jnp.isfinite(y_pred)))

    # Cross-check the folded/fused Pallas kernel against a literal plain-JAX
    # port of the PyTorch forward (full softmax/bmm co-attention path, f32),
    # evaluated on the same (bf16-valued) backbone features.
    img_feat = image_model(x["image"], params)
    txt_feat = text_model(x["input_ids"], params)
    y_ref = reference_forward(txt_feat, img_feat, params)
    assert jnp.allclose(y_pred, y_ref, rtol=2e-2, atol=2e-3), (y_pred, y_ref)

    print("KERNEL_OK")
</pallas_src>

<mosaic_0001>
module attributes {stable_mosaic.version = 11 : i64} {
  func.func @fusion_kernel(%arg0: i32, %arg1: memref<16x128xbf16, #tpu.memory_space<vmem>>, %arg2: memref<128x128xbf16, #tpu.memory_space<vmem>>, %arg3: memref<1x128xf32, #tpu.memory_space<vmem>>, %arg4: memref<128x128xbf16, #tpu.memory_space<vmem>>, %arg5: memref<1x128xf32, #tpu.memory_space<vmem>>, %arg6: memref<16x128xbf16, #tpu.memory_space<vmem>>) attributes {dimension_semantics = [#tpu.dimension_semantics<parallel>], iteration_bounds = array<i64: 1>, scalar_prefetch = 0 : i64, scratch_operands = 0 : i64, tpu.core_type = #tpu.core_type<tc>, window_params = [{transform_indices = @transform_0, window_bounds = array<i64: 16, 128>}, {pipeline_mode = #tpu.pipeline_mode<synchronous>, transform_indices = @transform_1, window_bounds = array<i64: 128, 128>}, {pipeline_mode = #tpu.pipeline_mode<synchronous>, transform_indices = @transform_2, window_bounds = array<i64: 1, 128>}, {pipeline_mode = #tpu.pipeline_mode<synchronous>, transform_indices = @transform_3, window_bounds = array<i64: 128, 128>}, {pipeline_mode = #tpu.pipeline_mode<synchronous>, transform_indices = @transform_4, window_bounds = array<i64: 1, 128>}, {transform_indices = @transform_5, window_bounds = array<i64: 16, 128>}]} {
    %c0 = arith.constant 0 : index
    %c0_0 = arith.constant 0 : index
    %0 = vector.load %arg1[%c0, %c0_0] : memref<16x128xbf16, #tpu.memory_space<vmem>>, vector<16x128xbf16>
    %c0_1 = arith.constant 0 : index
    %c0_2 = arith.constant 0 : index
    %1 = vector.load %arg2[%c0_1, %c0_2] : memref<128x128xbf16, #tpu.memory_space<vmem>>, vector<128x128xbf16>
    %cst = arith.constant dense<0.000000e+00> : vector<16x128xf32>
    %2 = tpu.matmul %0, %1, %cst {dimension_numbers = #tpu.dot_dimension_numbers<[1], [0], [0], [1], [0, 0, 1, 1], [], []>} : vector<16x128xbf16>, vector<128x128xbf16>, vector<16x128xf32> -> vector<16x128xf32>
    %c0_3 = arith.constant 0 : index
    %c0_4 = arith.constant 0 : index
    %3 = vector.load %arg3[%c0_3, %c0_4] : memref<1x128xf32, #tpu.memory_space<vmem>>, vector<1x128xf32>
    %4 = vector.broadcast %3 : vector<1x128xf32> to vector<16x128xf32>
    %5 = arith.addf %2, %4 : vector<16x128xf32>
    %cst_5 = arith.constant 0.000000e+00 : f32
    %6 = vector.broadcast %cst_5 : f32 to vector<16x128xf32>
    %7 = arith.maximumf %5, %6 : vector<16x128xf32>
    %8 = arith.truncf %7 : vector<16x128xf32> to vector<16x128xbf16>
    %c0_6 = arith.constant 0 : index
    %c0_7 = arith.constant 0 : index
    %9 = vector.load %arg4[%c0_6, %c0_7] : memref<128x128xbf16, #tpu.memory_space<vmem>>, vector<128x128xbf16>
    %cst_8 = arith.constant dense<0.000000e+00> : vector<16x128xf32>
    %10 = tpu.matmul %8, %9, %cst_8 {dimension_numbers = #tpu.dot_dimension_numbers<[1], [0], [0], [1], [0, 0, 1, 1], [], []>} : vector<16x128xbf16>, vector<128x128xbf16>, vector<16x128xf32> -> vector<16x128xf32>
    %c0_9 = arith.constant 0 : index
    %c0_10 = arith.constant 0 : index
    %11 = vector.load %arg5[%c0_9, %c0_10] : memref<1x128xf32, #tpu.memory_space<vmem>>, vector<1x128xf32>
    %12 = vector.broadcast %11 : vector<1x128xf32> to vector<16x128xf32>
    %13 = arith.addf %10, %12 : vector<16x128xf32>
    %14 = arith.truncf %13 : vector<16x128xf32> to vector<16x128xbf16>
    %c0_11 = arith.constant 0 : index
    %c0_12 = arith.constant 0 : index
    %15 = vector.load %arg6[%c0_11, %c0_12] : memref<16x128xbf16, #tpu.memory_space<vmem>>, vector<16x128xbf16>
    tpu.vector_store %arg6[%c0_11, %c0_12], %14 {strides = array<i32>} : memref<16x128xbf16, #tpu.memory_space<vmem>>, vector<16x128xbf16>,
    return
  }
  func.func @transform_0(%arg0: i32) -> (i32, i32) {
    %c0_i32 = arith.constant 0 : i32
    %c0_i32_0 = arith.constant 0 : i32
    return %arg0, %c0_i32 : i32, i32
  }
  func.func @transform_1(%arg0: i32) -> (i32, i32) {
    %c0_i32 = arith.constant 0 : i32
    %c0_i32_0 = arith.constant 0 : i32
    %c0_i32_1 = arith.constant 0 : i32
    return %c0_i32, %c0_i32_0 : i32, i32
  }
  func.func @transform_2(%arg0: i32) -> (i32, i32) {
    %c0_i32 = arith.constant 0 : i32
    %c0_i32_0 = arith.constant 0 : i32
    %c0_i32_1 = arith.constant 0 : i32
    return %c0_i32, %c0_i32_0 : i32, i32
  }
  func.func @transform_3(%arg0: i32) -> (i32, i32) {
    %c0_i32 = arith.constant 0 : i32
    %c0_i32_0 = arith.constant 0 : i32
    %c0_i32_1 = arith.constant 0 : i32
    return %c0_i32, %c0_i32_0 : i32, i32
  }
  func.func @transform_4(%arg0: i32) -> (i32, i32) {
    %c0_i32 = arith.constant 0 : i32
    %c0_i32_0 = arith.constant 0 : i32
    %c0_i32_1 = arith.constant 0 : i32
    return %c0_i32, %c0_i32_0 : i32, i32
  }
  func.func @transform_5(%arg0: i32) -> (i32, i32) {
    %c0_i32 = arith.constant 0 : i32
    %c0_i32_0 = arith.constant 0 : i32
    return %arg0, %c0_i32 : i32, i32
  }
}

</mosaic_0001>

<llo_original>
// kernel: tpu_custom_call.1
$region0: #{tpu_custom_call.1}
  #allocation0 [shape = 'u32[]', space=smem, size = 0x4, offset = 0x4, fixed_abs, tag = 'smem constant byte address 0x4 - core index']
  #allocation1 [shape = 'u32[144,128]{1,0:T(1,128)}', space=vmem, size = 0x12000, scoped, tag = 'internal scratch']
  %s0 = inlined_call_operand.hbm [shape: bf16[2,128], index: 0, kind: input, shape index: {}]
  %s1 = inlined_call_operand.hbm [shape: bf16[128,128], index: 1, kind: input, shape index: {}]
  %s2 = inlined_call_operand.vmem [shape: f32[1,128], index: 2, kind: input, shape index: {}]
  %s3 = inlined_call_operand.hbm [shape: bf16[128,128], index: 3, kind: input, shape index: {}]
  %s4 = inlined_call_operand.vmem [shape: f32[1,128], index: 4, kind: input, shape index: {}]
  %s5 = inlined_call_operand.hbm [shape: bf16[2,128], index: 5, kind: output, shape index: {}]
  %s6 = sld [smem:[#allocation0]]
  $region42: #{tpu_custom_call.1} parent=0
    _
  %s8 = ssub.s32 1, %s6
  %s9 = scalar_select 0, %s8, %s6
  $region1: #{tpu_custom_call.1} parent=0
    #allocation2 [shape = 'u8[4096]{0}', space=vmem, size = 0x1000, scoped, tag = 'input window, operand 0, single buffered']
    #allocation3 [shape = 's32[1]{0}', space=sflag, size = 0x4, scoped, tag = 'scoped memory for tpu_custom_call.1']
    #allocation4 [shape = 's32[1]{0}', space=sflag, size = 0x4, scoped, tag = 'scoped memory for tpu_custom_call.1']
    #allocation5 [shape = 'u8[32768]{0}', space=vmem, size = 0x8000, scoped, tag = 'input window, operand 1, single buffered']
    #allocation6 [shape = 's32[1]{0}', space=sflag, size = 0x4, scoped, tag = 'scoped memory for tpu_custom_call.1']
    #allocation7 [shape = 'u8[32768]{0}', space=vmem, size = 0x8000, scoped, tag = 'input window, operand 3, single buffered']
    #allocation8 [shape = 'u8[4096]{0}', space=vmem, size = 0x1000, scoped, tag = 'output window, operand 0, single buffered']
    %10 = vsyncpa [#allocation3], 0
    %11 = vsyncpa [#allocation6], 0
    %12 = vsyncpa [#allocation4], 0
    // Predicated region
    $region2: #{tpu_custom_call.1} parent=1 // pred_check
      _
    $region3: #{tpu_custom_call.1} parent=1 // pred_check_branch
      %14 = sbr.rel (0) target = $region5
    $region4: #{tpu_custom_call.1} parent=1 // pred_region
      %s16 = ssub.s32 128, 16
      %17 = vsyncadd [#allocation3], %s16
      %s18 = sshll.u32 [#allocation2], 4
      %s19 = int_to_ptr.vmem [resolvable:$true] %s18
      %24 = dma.hbm_to_vmem [thread:$0]  %s0, 16, %s19, [#allocation3], 16, 16, 1
    $region5: #{tpu_custom_call.1} parent=1 // pred_fallthru
      _
    // Predicated region
    $region6: #{tpu_custom_call.1} parent=1 // pred_check
      _
    $region7: #{tpu_custom_call.1} parent=1 // pred_check_branch
      %26 = sbr.rel (0) target = $region9
    $region8: #{tpu_custom_call.1} parent=1 // pred_region
      %s28 = ssub.s32 1024, 1024
      %29 = vsyncadd [#allocation6], %s28
      %s30 = sshll.u32 [#allocation5], 4
      %s31 = int_to_ptr.vmem [resolvable:$true] %s30
      %36 = dma.hbm_to_vmem [thread:$0]  %s1, 1024, %s31, [#allocation6], 64, 64, 4
    $region9: #{tpu_custom_call.1} parent=1 // pred_fallthru
      _
    // Predicated region
    $region10: #{tpu_custom_call.1} parent=1 // pred_check
      _
    $region11: #{tpu_custom_call.1} parent=1 // pred_check_branch
      %38 = sbr.rel (0) target = $region13
    $region12: #{tpu_custom_call.1} parent=1 // pred_region
      _
    $region13: #{tpu_custom_call.1} parent=1 // pred_fallthru
      _
    // Predicated region
    $region14: #{tpu_custom_call.1} parent=1 // pred_check
      _
    $region15: #{tpu_custom_call.1} parent=1 // pred_check_branch
      %40 = sbr.rel (0) target = $region17
    $region16: #{tpu_custom_call.1} parent=1 // pred_region
      %s42 = ssub.s32 1024, 1024
      %43 = vsyncadd [#allocation6], %s42
      %s44 = sshll.u32 [#allocation7], 4
      %s45 = int_to_ptr.vmem [resolvable:$true] %s44
      %50 = dma.hbm_to_vmem [thread:$0]  %s3, 1024, %s45, [#allocation6], 64, 64, 4
    $region17: #{tpu_custom_call.1} parent=1 // pred_fallthru
      _
    // Predicated region
    $region18: #{tpu_custom_call.1} parent=1 // pred_check
      _
    $region19: #{tpu_custom_call.1} parent=1 // pred_check_branch
      %52 = sbr.rel (0) target = $region21
    $region20: #{tpu_custom_call.1} parent=1 // pred_region
      _
    $region21: #{tpu_custom_call.1} parent=1 // pred_fallthru
      _
    // Predicated region
    $region22: #{tpu_custom_call.1} parent=1 // pred_check
      _
    $region23: #{tpu_custom_call.1} parent=1 // pred_check_branch
      %54 = sbr.rel (0) target = $region25
    $region24: #{tpu_custom_call.1} parent=1 // pred_region
      %55 = dma.done [#allocation3], 128
    $region25: #{tpu_custom_call.1} parent=1 // pred_fallthru
      _
    // Predicated region
    $region26: #{tpu_custom_call.1} parent=1 // pred_check
      _
    $region27: #{tpu_custom_call.1} parent=1 // pred_check_branch
      %57 = sbr.rel (0) target = $region29
    $region28: #{tpu_custom_call.1} parent=1 // pred_region
      %58 = dma.done [#allocation6], 1024
    $region29: #{tpu_custom_call.1} parent=1 // pred_fallthru
      _
    // Predicated region
    $region30: #{tpu_custom_call.1} parent=1 // pred_check
      _
    $region31: #{tpu_custom_call.1} parent=1 // pred_check_branch
      %60 = sbr.rel (0) target = $region33
    $region32: #{tpu_custom_call.1} parent=1 // pred_region
      %61 = dma.done [#allocation6], 1024
    $region33: #{tpu_custom_call.1} parent=1 // pred_fallthru
      _
    %v63 = vld [vmem:[#allocation2] sm:$0x1]
    %v64 = vld [vmem:[#allocation2 + $0x1] sm:$0x1]
    %v65 = vld [vmem:[#allocation2 + $0x2] sm:$0x1]
    %v66 = vld [vmem:[#allocation2 + $0x3] sm:$0x1]
    %v67 = vld [vmem:[#allocation2 + $0x4] sm:$0x1]
    %v68 = vld [vmem:[#allocation2 + $0x5] sm:$0x1]
    %v69 = vld [vmem:[#allocation2 + $0x6] sm:$0x1]
    %v70 = vld [vmem:[#allocation2 + $0x7] sm:$0x1]
    %v71 = vld [vmem:[#allocation5] sm:$0xf]
    %v72 = vld [vmem:[#allocation5 + $0x4] sm:$0xf]
    %v73 = vld [vmem:[#allocation5 + $0x8] sm:$0xf]
    %v74 = vld [vmem:[#allocation5 + $0xc] sm:$0xf]
    %v75 = vld [vmem:[#allocation5 + $0x10] sm:$0xf]
    %v76 = vld [vmem:[#allocation5 + $0x14] sm:$0xf]
    %v77 = vld [vmem:[#allocation5 + $0x18] sm:$0xf]
    %v78 = vld [vmem:[#allocation5 + $0x1c] sm:$0xf]
    %v79 = vld [vmem:[#allocation5 + $0x20] sm:$0xf]
    %v80 = vld [vmem:[#allocation5 + $0x24] sm:$0xf]
    %v81 = vld [vmem:[#allocation5 + $0x28] sm:$0xf]
    %v82 = vld [vmem:[#allocation5 + $0x2c] sm:$0xf]
    %v83 = vld [vmem:[#allocation5 + $0x30] sm:$0xf]
    %v84 = vld [vmem:[#allocation5 + $0x34] sm:$0xf]
    %v85 = vld [vmem:[#allocation5 + $0x38] sm:$0xf]
    %v86 = vld [vmem:[#allocation5 + $0x3c] sm:$0xf]
    %v87 = vld [vmem:[%s2] sm:$0x1]
    %v89 = vlaneseq
    %v90 = vshrl.u32 %v89, 7
    %v91 = vsub.s32 0, %v90
    %v92 = vrot.slane %v87, %v91
    %v102 = vcombine.low %v63, %v64
    %v103 = vcombine.low %v65, %v66
    %v104 = vcombine.low %v67, %v68
    %v105 = vcombine.low %v69, %v70
    %v107 = vunpack.c.l.s4 1966171168
    %v108 = vunpack.c.0.s8 %v107
    %v109 = vlaneseq
    %v110 = vshrl.u32 %v109, 7
    %v111 = vsub.s32 %v108, %v110
    %v112 = vrot.slane %v102, %v111
    %v114 = vunpack.c.l.s4 1966171168
    %v115 = vunpack.c.0.s8 %v114
    %v116 = vlaneseq
    %v117 = vshrl.u32 %v116, 7
    %v118 = vsub.s32 %v115, %v117
    %v119 = vrot.slane %v103, %v118
    %v121 = vunpack.c.l.s4 1966171168
    %v122 = vunpack.c.0.s8 %v121
    %v123 = vlaneseq
    %v124 = vshrl.u32 %v123, 7
    %v125 = vsub.s32 %v122, %v124
    %v126 = vrot.slane %v104, %v125
    %v128 = vunpack.c.l.s4 1966171168
    %v129 = vunpack.c.0.s8 %v128
    %v130 = vlaneseq
    %v131 = vshrl.u32 %v130, 7
    %v132 = vsub.s32 %v129, %v131
    %v133 = vrot.slane %v105, %v132
    %v134 = vcombine.low %v112, %v119
    %v135 = vcombine.low %v126, %v133
    %v137 = vunpack.c.l.s4 1966171168
    %v138 = vunpack.c.0.s8 %v137
    %v139 = vlaneseq
    %v140 = vshrl.u32 %v139, 7
    %v141 = vsub.s32 %v138, %v140
    %v142 = vrot.slane %v134, %v141
    %v144 = vunpack.c.l.s4 1966171168
    %v145 = vunpack.c.0.s8 %v144
    %v146 = vlaneseq
    %v147 = vshrl.u32 %v146, 7
    %v148 = vsub.s32 %v145, %v147
    %v149 = vrot.slane %v135, %v148
    %v150 = vcombine.low %v142, %v149
    %v168 = vunpack.c.l.b16 %v71
    %v169 = vunpack.c.l.b16 %v72
    %v170 = vunpack.c.l.b16 %v73
    %v171 = vunpack.c.l.b16 %v74
    %v172 = vunpack.c.l.b16 %v75
    %v173 = vunpack.c.l.b16 %v76
    %v174 = vunpack.c.l.b16 %v77
    %v175 = vunpack.c.l.b16 %v78
    %v176 = vunpack.c.l.b16 %v79
    %v177 = vunpack.c.l.b16 %v80
    %v178 = vunpack.c.l.b16 %v81
    %v179 = vunpack.c.l.b16 %v82
    %v180 = vunpack.c.l.b16 %v83
    %v181 = vunpack.c.l.b16 %v84
    %v182 = vunpack.c.l.b16 %v85
    %v183 = vunpack.c.l.b16 %v86
    %v184 = vpack.c.b16 %v169, %v168
    %v185 = vpack.c.b16 %v171, %v170
    %v186 = vpack.c.b16 %v173, %v172
    %v187 = vpack.c.b16 %v175, %v174
    %v188 = vpack.c.b16 %v177, %v176
    %v189 = vpack.c.b16 %v179, %v178
    %v190 = vpack.c.b16 %v181, %v180
    %v191 = vpack.c.b16 %v183, %v182
    %200 = vmatprep.subr.bf16.mxu0 0
    %201 = vmatpush1.bf16.msra.mxu0 %v184
    %202 = vmatprep.subr.bf16.mxu0 0
    %203 = vmatpush1.bf16.msra.mxu0 %v185
    %204 = vmatprep.subr.bf16.mxu0 0
    %205 = vmatpush1.bf16.msra.mxu0 %v186
    %206 = vmatprep.subr.bf16.mxu0 0
    %207 = vmatpush1.bf16.msra.mxu0 %v187
    %208 = vmatprep.subr.bf16.mxu0 0
    %209 = vmatpush1.bf16.msra.mxu0 %v188
    %210 = vmatprep.subr.bf16.mxu0 0
    %211 = vmatpush1.bf16.msra.mxu0 %v189
    %212 = vmatprep.subr.bf16.mxu0 0
    %213 = vmatpush1.bf16.msra.mxu0 %v190
    %214 = vmatprep.subr.bf16.mxu0 0
    %215 = vmatpush1.bf16.msra.mxu0 %v191
    %216 = vmatprep.subr.bf16.mxu0 0
    %217 = vmatpush1.bf16.msra.mxu0 0
    %218 = vmatprep.subr.bf16.mxu0 0
    %219 = vmatpush1.bf16.msra.mxu0 0
    %220 = vmatprep.subr.bf16.mxu0 0
    %221 = vmatpush1.bf16.msra.mxu0 0
    %222 = vmatprep.subr.bf16.mxu0 0
    %223 = vmatpush1.bf16.msra.mxu0 0
    %224 = vmatprep.subr.bf16.mxu0 0
    %225 = vmatpush1.bf16.msra.mxu0 0
    %226 = vmatprep.subr.bf16.mxu0 0
    %227 = vmatpush1.bf16.msra.mxu0 0
    %228 = vmatprep.subr.bf16.mxu0 0
    %229 = vmatpush1.bf16.msra.mxu0 0
    %230 = vmatprep.subr.bf16.mxu0 0
    %231 = vmatpush1.bf16.msra.mxu0 0
    %232 = vmatprep.mubr.bf16.mxu0 0
    %233 = vmatmul.mubr.bf16.gmra.mrb[0].mxu0 %v150
    %v234 = vpop.f32.mrb[0].mxu0
    %v235 = vadd.f32 %v92, %v234
    %v236 = vpop.f32.mrb[0].mxu0
    %v237 = vpop.f32.mrb[0].mxu0
    %v238 = vadd.f32 %v92, %v237
    %v239 = vpop.f32.mrb[0].mxu0
    %240 = vdwg.mxu0
    %v241 = vmax.f32 %v235, 0.0
    %v242 = vmax.f32 %v238, 0.0
    %v243 = vpack.c.bf16 %v242, %v241
    %v244 = vld [vmem:[#allocation7] sm:$0xf]
    %v245 = vld [vmem:[#allocation7 + $0x4] sm:$0xf]
    %v246 = vld [vmem:[#allocation7 + $0x8] sm:$0xf]
    %v247 = vld [vmem:[#allocation7 + $0xc] sm:$0xf]
    %v248 = vld [vmem:[#allocation7 + $0x10] sm:$0xf]
    %v249 = vld [vmem:[#allocation7 + $0x14] sm:$0xf]
    %v250 = vld [vmem:[#allocation7 + $0x18] sm:$0xf]
    %v251 = vld [vmem:[#allocation7 + $0x1c] sm:$0xf]
    %v252 = vld [vmem:[#allocation7 + $0x20] sm:$0xf]
    %v253 = vld [vmem:[#allocation7 + $0x24] sm:$0xf]
    %v254 = vld [vmem:[#allocation7 + $0x28] sm:$0xf]
    %v255 = vld [vmem:[#allocation7 + $0x2c] sm:$0xf]
    %v256 = vld [vmem:[#allocation7 + $0x30] sm:$0xf]
    %v257 = vld [vmem:[#allocation7 + $0x34] sm:$0xf]
    %v258 = vld [vmem:[#allocation7 + $0x38] sm:$0xf]
    %v259 = vld [vmem:[#allocation7 + $0x3c] sm:$0xf]
    %v260 = vld [vmem:[%s4] sm:$0x1]
    %v262 = vlaneseq
    %v263 = vshrl.u32 %v262, 7
    %v264 = vsub.s32 0, %v263
    %v265 = vrot.slane %v260, %v264
    %v283 = vunpack.c.l.b16 %v244
    %v284 = vunpack.c.l.b16 %v245
    %v285 = vunpack.c.l.b16 %v246
    %v286 = vunpack.c.l.b16 %v247
    %v287 = vunpack.c.l.b16 %v248
    %v288 = vunpack.c.l.b16 %v249
    %v289 = vunpack.c.l.b16 %v250
    %v290 = vunpack.c.l.b16 %v251
    %v291 = vunpack.c.l.b16 %v252
    %v292 = vunpack.c.l.b16 %v253
    %v293 = vunpack.c.l.b16 %v254
    %v294 = vunpack.c.l.b16 %v255
    %v295 = vunpack.c.l.b16 %v256
    %v296 = vunpack.c.l.b16 %v257
    %v297 = vunpack.c.l.b16 %v258
    %v298 = vunpack.c.l.b16 %v259
    %v299 = vpack.c.b16 %v284, %v283
    %v300 = vpack.c.b16 %v286, %v285
    %v301 = vpack.c.b16 %v288, %v287
    %v302 = vpack.c.b16 %v290, %v289
    %v303 = vpack.c.b16 %v292, %v291
    %v304 = vpack.c.b16 %v294, %v293
    %v305 = vpack.c.b16 %v296, %v295
    %v306 = vpack.c.b16 %v298, %v297
    %315 = vmatprep.subr.bf16.mxu0 0
    %316 = vmatpush1.bf16.msra.mxu0 %v299
    %317 = vmatprep.subr.bf16.mxu0 0
    %318 = vmatpush1.bf16.msra.mxu0 %v300
    %319 = vmatprep.subr.bf16.mxu0 0
    %320 = vmatpush1.bf16.msra.mxu0 %v301
    %321 = vmatprep.subr.bf16.mxu0 0
    %322 = vmatpush1.bf16.msra.mxu0 %v302
    %323 = vmatprep.subr.bf16.mxu0 0
    %324 = vmatpush1.bf16.msra.mxu0 %v303
    %325 = vmatprep.subr.bf16.mxu0 0
    %326 = vmatpush1.bf16.msra.mxu0 %v304
    %327 = vmatprep.subr.bf16.mxu0 0
    %328 = vmatpush1.bf16.msra.mxu0 %v305
    %329 = vmatprep.subr.bf16.mxu0 0
    %330 = vmatpush1.bf16.msra.mxu0 %v306
    %331 = vmatprep.subr.bf16.mxu0 0
    %332 = vmatpush1.bf16.msra.mxu0 0
    %333 = vmatprep.subr.bf16.mxu0 0
    %334 = vmatpush1.bf16.msra.mxu0 0
    %335 = vmatprep.subr.bf16.mxu0 0
    %336 = vmatpush1.bf16.msra.mxu0 0
    %337 = vmatprep.subr.bf16.mxu0 0
    %338 = vmatpush1.bf16.msra.mxu0 0
    %339 = vmatprep.subr.bf16.mxu0 0
    %340 = vmatpush1.bf16.msra.mxu0 0
    %341 = vmatprep.subr.bf16.mxu0 0
    %342 = vmatpush1.bf16.msra.mxu0 0
    %343 = vmatprep.subr.bf16.mxu0 0
    %344 = vmatpush1.bf16.msra.mxu0 0
    %345 = vmatprep.subr.bf16.mxu0 0
    %346 = vmatpush1.bf16.msra.mxu0 0
    %347 = vmatprep.mubr.bf16.mxu0 0
    %348 = vmatmul.mubr.bf16.gmra.mrb[0].mxu0 %v243
    %v349 = vpop.f32.mrb[0].mxu0
    %v350 = vadd.f32 %v265, %v349
    %v351 = vpop.f32.mrb[0].mxu0
    %v352 = vpop.f32.mrb[0].mxu0
    %v353 = vadd.f32 %v265, %v352
    %v354 = vpop.f32.mrb[0].mxu0
    %355 = vdwg.mxu0
    %v356 = vpack.c.bf16 %v353, %v350
    %v358 = vcombine.high %v356, %v356
    %v360 = vunpack.c.l.s4 1966171168
    %v361 = vunpack.c.0.s8 %v360
    %v362 = vlaneseq
    %v363 = vshrl.u32 %v362, 7
    %v364 = vsub.s32 %v361, %v363
    %v365 = vrot.slane %v356, %v364
    %v367 = vunpack.c.l.s4 1966171168
    %v368 = vunpack.c.0.s8 %v367
    %v369 = vlaneseq
    %v370 = vshrl.u32 %v369, 7
    %v371 = vsub.s32 %v368, %v370
    %v372 = vrot.slane %v358, %v371
    %v373 = vcombine.high %v365, %v365
    %v374 = vcombine.high %v372, %v372
    %v376 = vunpack.c.l.s4 1966171168
    %v377 = vunpack.c.0.s8 %v376
    %v378 = vlaneseq
    %v379 = vshrl.u32 %v378, 7
    %v380 = vsub.s32 %v377, %v379
    %v381 = vrot.slane %v365, %v380
    %v383 = vunpack.c.l.s4 1966171168
    %v384 = vunpack.c.0.s8 %v383
    %v385 = vlaneseq
    %v386 = vshrl.u32 %v385, 7
    %v387 = vsub.s32 %v384, %v386
    %v388 = vrot.slane %v372, %v387
    %v390 = vunpack.c.l.s4 1966171168
    %v391 = vunpack.c.0.s8 %v390
    %v392 = vlaneseq
    %v393 = vshrl.u32 %v392, 7
    %v394 = vsub.s32 %v391, %v393
    %v395 = vrot.slane %v373, %v394
    %v397 = vunpack.c.l.s4 1966171168
    %v398 = vunpack.c.0.s8 %v397
    %v399 = vlaneseq
    %v400 = vshrl.u32 %v399, 7
    %v401 = vsub.s32 %v398, %v400
    %v402 = vrot.slane %v374, %v401
    %v403 = vcombine.high %v381, %v381
    %v404 = vcombine.high %v388, %v388
    %v405 = vcombine.high %v395, %v395
    %v406 = vcombine.high %v402, %v402
    %415 = vst [vmem:[#allocation8] sm:$0x1] %v381
    %416 = vst [vmem:[#allocation8 + $0x1] sm:$0x1] %v395
    %417 = vst [vmem:[#allocation8 + $0x2] sm:$0x1] %v403
    %418 = vst [vmem:[#allocation8 + $0x3] sm:$0x1] %v405
    %419 = vst [vmem:[#allocation8 + $0x4] sm:$0x1] %v388
    %420 = vst [vmem:[#allocation8 + $0x5] sm:$0x1] %v402
    %421 = vst [vmem:[#allocation8 + $0x6] sm:$0x1] %v404
    %422 = vst [vmem:[#allocation8 + $0x7] sm:$0x1] %v406
    // Predicated region
    $region34: #{tpu_custom_call.1} parent=1 // pred_check
      _
    $region35: #{tpu_custom_call.1} parent=1 // pred_check_branch
      %424 = sbr.rel (0) target = $region37
    $region36: #{tpu_custom_call.1} parent=1 // pred_region
      %s426 = ssub.s32 128, 16
      %427 = vsyncadd [#allocation4], %s426
      %s428 = sshll.u32 [#allocation8], 4
      %s429 = int_to_ptr.vmem [resolvable:$true] %s428
      %434 = dma.vmem_to_hbm [thread:$0]  %s429, 16, %s5, [#allocation4], 16, 16, 1
    $region37: #{tpu_custom_call.1} parent=1 // pred_fallthru
      _
    // Predicated region
    $region38: #{tpu_custom_call.1} parent=1 // pred_check
      _
    $region39: #{tpu_custom_call.1} parent=1 // pred_check_branch
      %436 = sbr.rel (0) target = $region41
    $region40: #{tpu_custom_call.1} parent=1 // pred_region
      %437 = dma.done [#allocation4], 128
    $region41: #{tpu_custom_call.1} parent=1 // pred_fallthru
      _
    %438 = vsyncpa [#allocation3], 1
    %439 = vsyncpa [#allocation6], 1
    %440 = vsyncpa [#allocation4], 1

</llo_original>
